<compile_context>
chip_gen: v7x
topology: tpu7x:2x2x1
jax: 0.10.0
libtpu: 0.0.40
codegen_flags: <defaults>
</compile_context>

<pallas_src>
import jax
import jax.numpy as jnp
from jax import lax
from jax.experimental import pallas as pl
from jax.experimental.pallas import tpu as pltpu


def _round_up(x, m):
    return (x + m - 1) // m * m


def _linear_t_kernel(x_ref, w_ref, b_ref, out_ref):
    # x_ref: (TB, K)  w_ref: (N, K)  b_ref: (N, 1)  out_ref: (N, TB)
    # Contract K of the weight with K of the x tile -> (N, TB) block.
    out_ref[...] = (
        lax.dot_general(
            w_ref[...], x_ref[...],
            dimension_numbers=(((1,), (1,)), ((), ())),
            preferred_element_type=jnp.float32,
        )
        + b_ref[...]
    ).astype(out_ref.dtype)


def simple_linear_baseline_forward(x, weight, bias, *, prediction_length):
    """x: (B, S, F); weight: (P*F, S*F) in PyTorch (out, in) layout; bias: (P*F,)."""
    B, S, F = x.shape
    K = S * F
    N = prediction_length * F

    x_flat = x.reshape(B, K).astype(jnp.float32)
    w = weight.astype(jnp.float32)          # native (N, K) layout, no transpose pass
    b_col = bias.astype(jnp.float32).reshape(N, 1)

    # Tiny-batch fallback: Pallas launch/pipeline overhead dominates, use XLA.
    if B < 128:
        out = x_flat @ w.T + bias.astype(jnp.float32)
        return out.reshape(B, prediction_length, F)

    # Batch tile: multiple of 128 (lane-dense output stores); keep >=2 grid
    # steps when B allows so v7x's two TensorCores both get work.
    TB = 512
    if B < 2 * TB:
        TB = max(128, _round_up(pl.cdiv(B, 2), 128))
    grid = pl.cdiv(B, TB)

    # Right-sized VMEM budget: double-buffered x tile + double-buffered output
    # tile + resident weight/bias, with 2x headroom (clamped to sane bounds).
    fp_bytes = (2 * TB * K + 2 * N * TB + N * K + N * 128) * 4
    vmem_limit = int(min(max(2 * fp_bytes, 4 << 20), 48 << 20))

    out_t = pl.pallas_call(
        _linear_t_kernel,
        out_shape=jax.ShapeDtypeStruct((N, B), jnp.float32),
        grid=(grid,),
        in_specs=[
            pl.BlockSpec((TB, K), lambda i: (i, 0)),   # x row tile
            pl.BlockSpec((N, K), lambda i: (0, 0)),    # weight (resident)
            pl.BlockSpec((N, 1), lambda i: (0, 0)),    # bias column (resident)
        ],
        out_specs=pl.BlockSpec((N, TB), lambda i: (0, i)),  # lane-dense (N, TB)
        compiler_params=pltpu.CompilerParams(
            dimension_semantics=("parallel",),
            vmem_limit_bytes=vmem_limit,
        ),
    )(x_flat, w, b_col)

    # One cheap (N, B) -> (B, P, F) transpose+reshape; total bytes = B*N*4.
    return out_t.T.reshape(B, prediction_length, F)


if __name__ == "__main__":
    key = jax.random.PRNGKey(0)
    kx, kw, kb, kx2 = jax.random.split(key, 4)

    # Small shapes consistent with the module's forward.
    batch, seq_len, input_dim, prediction_length = 2, 8, 4, 6
    x_small = jax.random.normal(kx, (batch, seq_len, input_dim), jnp.float32)
    weight = 0.05 * jax.random.normal(
        kw, (prediction_length * input_dim, seq_len * input_dim), jnp.float32)
    bias = 0.05 * jax.random.normal(
        kb, (prediction_length * input_dim,), jnp.float32)

    def ref_fn(xx):
        bb = xx.shape[0]
        return (xx.reshape(bb, -1) @ weight.T + bias).reshape(
            bb, prediction_length, input_dim)

    # 1) Tiny batch (module example shape) -> XLA fallback path.
    out_small = jax.block_until_ready(
        simple_linear_baseline_forward(
            x_small, weight, bias, prediction_length=prediction_length))
    assert out_small.shape == (batch, prediction_length, input_dim)
    assert bool(jnp.all(jnp.isfinite(out_small)))
    assert bool(jnp.allclose(out_small, ref_fn(x_small), atol=1e-5, rtol=1e-5))

    # 2) Moderate batch -> Pallas path (2 grid steps, exercises the kernel).
    big_batch = 512
    x_big = jax.random.normal(kx2, (big_batch, seq_len, input_dim), jnp.float32)
    out_big = jax.block_until_ready(
        simple_linear_baseline_forward(
            x_big, weight, bias, prediction_length=prediction_length))
    assert out_big.shape == (big_batch, prediction_length, input_dim)
    assert bool(jnp.all(jnp.isfinite(out_big)))
    assert bool(jnp.allclose(out_big, ref_fn(x_big), atol=1e-5, rtol=1e-5))

    print("KERNEL_OK")
</pallas_src>

<mosaic_0001>
module attributes {stable_mosaic.version = 11 : i64} {
  func.func @_linear_t_kernel(%arg0: i32, %arg1: memref<256x32xf32, #tpu.memory_space<vmem>>, %arg2: memref<24x32xf32, #tpu.memory_space<vmem>>, %arg3: memref<24x1xf32, #tpu.memory_space<vmem>>, %arg4: memref<24x256xf32, #tpu.memory_space<vmem>>) attributes {dimension_semantics = [#tpu.dimension_semantics<parallel>], iteration_bounds = array<i64: 2>, scalar_prefetch = 0 : i64, scratch_operands = 0 : i64, tpu.core_type = #tpu.core_type<tc>, window_params = [{transform_indices = @transform_0, window_bounds = array<i64: 256, 32>}, {pipeline_mode = #tpu.pipeline_mode<synchronous>, transform_indices = @transform_1, window_bounds = array<i64: 24, 32>}, {pipeline_mode = #tpu.pipeline_mode<synchronous>, transform_indices = @transform_2, window_bounds = array<i64: 24, 1>}, {transform_indices = @transform_3, window_bounds = array<i64: 24, 256>}]} {
    %c0 = arith.constant 0 : index
    %c0_0 = arith.constant 0 : index
    %0 = vector.load %arg2[%c0, %c0_0] : memref<24x32xf32, #tpu.memory_space<vmem>>, vector<24x32xf32>
    %c0_1 = arith.constant 0 : index
    %c0_2 = arith.constant 0 : index
    %1 = vector.load %arg1[%c0_1, %c0_2] : memref<256x32xf32, #tpu.memory_space<vmem>>, vector<256x32xf32>
    %cst = arith.constant dense<0.000000e+00> : vector<24x256xf32>
    %2 = tpu.matmul %0, %1, %cst {dimension_numbers = #tpu.dot_dimension_numbers<[1], [1], [0], [0], [0, 0, 1, 0], [], []>} : vector<24x32xf32>, vector<256x32xf32>, vector<24x256xf32> -> vector<24x256xf32>
    %c0_3 = arith.constant 0 : index
    %c0_4 = arith.constant 0 : index
    %3 = vector.load %arg3[%c0_3, %c0_4] : memref<24x1xf32, #tpu.memory_space<vmem>>, vector<24x1xf32>
    %4 = vector.broadcast %3 : vector<24x1xf32> to vector<24x256xf32>
    %5 = arith.addf %2, %4 : vector<24x256xf32>
    %c0_5 = arith.constant 0 : index
    %c0_6 = arith.constant 0 : index
    %6 = vector.load %arg4[%c0_5, %c0_6] : memref<24x256xf32, #tpu.memory_space<vmem>>, vector<24x256xf32>
    tpu.vector_store %arg4[%c0_5, %c0_6], %5 {strides = array<i32>} : memref<24x256xf32, #tpu.memory_space<vmem>>, vector<24x256xf32>,
    return
  }
  func.func @transform_0(%arg0: i32) -> (i32, i32) {
    %c0_i32 = arith.constant 0 : i32
    %c0_i32_0 = arith.constant 0 : i32
    return %arg0, %c0_i32 : i32, i32
  }
  func.func @transform_1(%arg0: i32) -> (i32, i32) {
    %c0_i32 = arith.constant 0 : i32
    %c0_i32_0 = arith.constant 0 : i32
    %c0_i32_1 = arith.constant 0 : i32
    return %c0_i32, %c0_i32_0 : i32, i32
  }
  func.func @transform_2(%arg0: i32) -> (i32, i32) {
    %c0_i32 = arith.constant 0 : i32
    %c0_i32_0 = arith.constant 0 : i32
    %c0_i32_1 = arith.constant 0 : i32
    return %c0_i32, %c0_i32_0 : i32, i32
  }
  func.func @transform_3(%arg0: i32) -> (i32, i32) {
    %c0_i32 = arith.constant 0 : i32
    %c0_i32_0 = arith.constant 0 : i32
    return %c0_i32, %arg0 : i32, i32
  }
}

</mosaic_0001>

<llo_original>
// kernel: tpu_custom_call.1
$region0: #{tpu_custom_call.1}
  #allocation0 [shape = 'u32[]', space=smem, size = 0x4, offset = 0x4, fixed_abs, tag = 'smem constant byte address 0x4 - core index']
  #allocation1 [shape = 'u32[144,128]{1,0:T(1,128)}', space=vmem, size = 0x12000, scoped, tag = 'internal scratch']
  %s0 = inlined_call_operand.vmem [shape: f32[512,32], index: 0, kind: input, shape index: {}]
  %s1 = inlined_call_operand.vmem [shape: f32[24,32], index: 1, kind: input, shape index: {}]
  %s2 = inlined_call_operand.vmem [shape: f32[24,1], index: 2, kind: input, shape index: {}]
  %s3 = inlined_call_operand.hbm [shape: f32[24,512], index: 3, kind: output, shape index: {}]
  %s4 = sld [smem:[#allocation0]]
  $region45: #{tpu_custom_call.1} parent=0
    _
  %s6 = ssub.s32 1, %s4
  %s7 = scalar_select 0, %s6, %s4
  $region1: #{tpu_custom_call.1} parent=0
    #allocation2 [shape = 'u8[49152]{0}', space=vmem, size = 0xc000, scoped, tag = 'output window, operand 0']
    #allocation3 [shape = 's32[2]{0}', space=sflag, size = 0x8, scoped, tag = 'scoped memory for tpu_custom_call.1']
    %8 = vsyncpa [#allocation3], 0
    %s9 = scalar_lea.sflag [#allocation3], 1
    %10 = vsyncpa %s9, 0
    loop: start=0, step=1, limit=4
    $region2: #{tpu_custom_call.1} parent=1 // loop_pre_header
      _
    $region3: #{tpu_custom_call.1} parent=1 // loop_header
      %s12 = sphi 0, %s16
      %p13 = scmp.ge.s32.totalorder %s12, 4
      %s22 = sphi 0, %s24
      %s25 = sphi 0, %s22
      %s26 = sphi 0, %s25
      %s42 = sphi 0, %s26
      %s46 = sphi 0, %s46
      %s48 = sphi 0, %s46
      %s49 = sphi 0, %s48
      %s63 = sphi 0, %s49
      %s67 = sphi 0, %s67
      %s69 = sphi 0, %s67
      %s70 = sphi 0, %s69
      %s84 = sphi 0, %s70
      %s90 = sphi 0, %s92
      %s93 = sphi 0, %s90
      %s94 = sphi 0, %s93
      %s110 = sphi 0, %s94
    $region4: #{tpu_custom_call.1} parent=1 // loop_header_branch
      %15 = sbr.rel (%p13) target = $region8
    $region5: #{tpu_custom_call.1} parent=1 // loop_body
      %s17 = ssub.s32 %s12, 1
      %s18 = ssub.s32 %s12, 2
      %s19 = sadd.s32 %s12, 1
      %s20 = ssub.s32 %s12, %s19
      %p21 = scmp.eq.s32.totalorder %s20, 0
      %s23 = sadd.s32 %s22, 1
      %s24 = scalar_select %p21, %s22, %s23
      %p27 = pneg %p21
      %p28 = scmp.eq.s32.totalorder %s12, 1
      %p29 = por %p27, %p28
      %p30 = scmp.ne.s32.totalorder %s22, %s25
      %p31 = scmp.eq.s32.totalorder %s12, 0
      %p32 = por %p30, %p31
      %p33 = scmp.ne.s32.totalorder %s22, %s25
      %p34 = scmp.eq.s32.totalorder %s17, 1
      %p35 = por %p33, %p34
      %p36 = scmp.ne.s32.totalorder %s25, %s26
      %p37 = scmp.eq.s32.totalorder %s17, 0
      %p38 = por %p36, %p37
      %p39 = scmp.ne.s32.totalorder %s25, %s26
      %p40 = scmp.eq.s32.totalorder %s18, 1
      %p41 = por %p39, %p40
      %p43 = scmp.ne.s32.totalorder %s26, %s42
      %p44 = scmp.eq.s32.totalorder %s18, 0
      %p45 = por %p43, %p44
      %s47 = sadd.s32 %s46, 1
      %p50 = scmp.eq.s32.totalorder %s12, 1
      %p51 = scmp.ne.s32.totalorder %s46, %s48
      %p52 = scmp.eq.s32.totalorder %s12, 0
      %p53 = por %p51, %p52
      %p54 = scmp.ne.s32.totalorder %s46, %s48
      %p55 = scmp.eq.s32.totalorder %s17, 1
      %p56 = por %p54, %p55
      %p57 = scmp.ne.s32.totalorder %s48, %s49
      %p58 = scmp.eq.s32.totalorder %s17, 0
      %p59 = por %p57, %p58
      %p60 = scmp.ne.s32.totalorder %s48, %s49
      %p61 = scmp.eq.s32.totalorder %s18, 1
      %p62 = por %p60, %p61
      %p64 = scmp.ne.s32.totalorder %s49, %s63
      %p65 = scmp.eq.s32.totalorder %s18, 0
      %p66 = por %p64, %p65
      %s68 = sadd.s32 %s67, 1
      %p71 = scmp.eq.s32.totalorder %s12, 1
      %p72 = scmp.ne.s32.totalorder %s67, %s69
      %p73 = scmp.eq.s32.totalorder %s12, 0
      %p74 = por %p72, %p73
      %p75 = scmp.ne.s32.totalorder %s67, %s69
      %p76 = scmp.eq.s32.totalorder %s17, 1
      %p77 = por %p75, %p76
      %p78 = scmp.ne.s32.totalorder %s69, %s70
      %p79 = scmp.eq.s32.totalorder %s17, 0
      %p80 = por %p78, %p79
      %p81 = scmp.ne.s32.totalorder %s69, %s70
      %p82 = scmp.eq.s32.totalorder %s18, 1
      %p83 = por %p81, %p82
      %p85 = scmp.ne.s32.totalorder %s70, %s84
      %p86 = scmp.eq.s32.totalorder %s18, 0
      %p87 = por %p85, %p86
      %s88 = ssub.s32 %s12, %s19
      %p89 = scmp.eq.s32.totalorder %s88, 0
      %s91 = sadd.s32 %s90, 1
      %s92 = scalar_select %p89, %s90, %s91
      %p95 = pneg %p89
      %p96 = scmp.eq.s32.totalorder %s12, 1
      %p97 = por %p95, %p96
      %p98 = scmp.ne.s32.totalorder %s90, %s93
      %p99 = scmp.eq.s32.totalorder %s12, 0
      %p100 = por %p98, %p99
      %p101 = scmp.ne.s32.totalorder %s90, %s93
      %p102 = scmp.eq.s32.totalorder %s17, 1
      %p103 = por %p101, %p102
      %p104 = scmp.ne.s32.totalorder %s93, %s94
      %p105 = scmp.eq.s32.totalorder %s17, 0
      %p106 = por %p104, %p105
      %p107 = scmp.ne.s32.totalorder %s93, %s94
      %p108 = scmp.eq.s32.totalorder %s18, 1
      %p109 = por %p107, %p108
      %p111 = scmp.ne.s32.totalorder %s94, %s110
      %p112 = scmp.eq.s32.totalorder %s18, 0
      %p113 = por %p111, %p112
      %p114 = scmp.le.s32.totalorder 1, %s12
      %p115 = scmp.lt.s32.totalorder %s12, 3
      %p116 = pnand %p114, %p115
      %p117 = pneg %p116
      // Predicated region
      $region9: #{tpu_custom_call.1} parent=5 // pred_check
        _
      $region10: #{tpu_custom_call.1} parent=5 // pred_check_branch
        %119 = sbr.rel (%p116) target = $region12
      $region11: #{tpu_custom_call.1} parent=5 // pred_region
        %s120 = ssub.s32 %s12, 1
        // Predicated region
        $region13: #{tpu_custom_call.1} parent=11 // pred_check
          %p121 = pneg %p59
        $region14: #{tpu_custom_call.1} parent=11 // pred_check_branch
          %123 = sbr.rel (%p121) target = $region16
        $region15: #{tpu_custom_call.1} parent=11 // pred_region
          _
        $region16: #{tpu_custom_call.1} parent=11 // pred_fallthru
          _
        // Predicated region
        $region17: #{tpu_custom_call.1} parent=11 // pred_check
          %p124 = pneg %p80
        $region18: #{tpu_custom_call.1} parent=11 // pred_check_branch
          %126 = sbr.rel (%p124) target = $region20
        $region19: #{tpu_custom_call.1} parent=11 // pred_region
          _
        $region20: #{tpu_custom_call.1} parent=11 // pred_fallthru
          _
      $region12: #{tpu_custom_call.1} parent=5 // pred_fallthru
        _
      %p127 = scmp.lt.s32.totalorder %s12, 2
      // Predicated region
      $region21: #{tpu_custom_call.1} parent=5 // pred_check
        %p128 = pneg %p127
      $region22: #{tpu_custom_call.1} parent=5 // pred_check_branch
        %130 = sbr.rel (%p128) target = $region24
      $region23: #{tpu_custom_call.1} parent=5 // pred_region
        // Predicated region
        $region25: #{tpu_custom_call.1} parent=23 // pred_check
          %p131 = pneg %p32
        $region26: #{tpu_custom_call.1} parent=23 // pred_check_branch
          %133 = sbr.rel (%p131) target = $region28
        $region27: #{tpu_custom_call.1} parent=23 // pred_region
          %s134 = smul.u32 32, %s12
          %p135 = scmp.lt.s32.totalorder %s134, 63
          %s136 = scalar_select %p135, %s134, 63
          %s137 = smul.addr %s136, 8
          %s138 = scalar_lea.vmem %s0, %s137
          %s139 = smul.u32 32, %s12
        $region28: #{tpu_custom_call.1} parent=23 // pred_fallthru
          _
      $region24: #{tpu_custom_call.1} parent=5 // pred_fallthru
        _
      %p140 = scmp.le.s32.totalorder 1, %s12
      %p141 = scmp.lt.s32.totalorder %s12, 3
      %p142 = pnand %p140, %p141
      %p143 = pneg %p142
      // Predicated region
      $region29: #{tpu_custom_call.1} parent=5 // pred_check
        _
      $region30: #{tpu_custom_call.1} parent=5 // pred_check_branch
        %145 = sbr.rel (%p142) target = $region32
      $region31: #{tpu_custom_call.1} parent=5 // pred_region
        %s146 = ssub.s32 %s12, 1
        %s147 = smul.u32 32, %s17
        %p148 = scmp.lt.s32.totalorder %s147, 63
        %s149 = scalar_select %p148, %s147, 63
        %s150 = smul.addr %s149, 8
        %s151 = scalar_lea.vmem %s0, %s150
        %p152 = pneg %p38
        %p153 = pneg %p35
        %p154 = pneg %p59
        %p155 = pneg %p56
        %p156 = pneg %p80
        %p157 = pneg %p77
        %p158 = pneg %p106
        %p159 = pneg %p103
        %s160 = sand.u32 %s93, 1
        %s161 = scalar_lea.sflag [#allocation3], %s160
        %s162 = sand.u32 %s93, 1
        %s163 = smul.addr %s162, 48
        %s164 = scalar_lea.vmem [#allocation2], %s163
        %s165 = smul.u32 32, %s17
        %p166 = scmp.lt.s32.totalorder %s165, 63
        %s167 = scalar_select %p166, %s165, 63
        %s168 = smul.addr %s167, 8
        %s169 = scalar_lea.vmem %s0, %s168
        %s170 = smul.u32 32, %s17
        %s171 = smul.u32 2, %s17
        %v172 = vld [vmem:[%s1] sm:$0xff]
        %v173 = vld [vmem:[%s1 + $0x8] sm:$0xff]
        %v174 = vld [vmem:[%s1 + $0x10] sm:$0xff]
        %v175 = vld [vmem:[%s169] sm:$0xff]
        %v176 = vld [vmem:[%s169 + $0x8] sm:$0xff]
        %v177 = vld [vmem:[%s169 + $0x10] sm:$0xff]
        %v178 = vld [vmem:[%s169 + $0x18] sm:$0xff]
        %v179 = vld [vmem:[%s169 + $0x20] sm:$0xff]
        %v180 = vld [vmem:[%s169 + $0x28] sm:$0xff]
        %v181 = vld [vmem:[%s169 + $0x30] sm:$0xff]
        %v182 = vld [vmem:[%s169 + $0x38] sm:$0xff]
        %v183 = vld [vmem:[%s169 + $0x40] sm:$0xff]
        %v184 = vld [vmem:[%s169 + $0x48] sm:$0xff]
        %v185 = vld [vmem:[%s169 + $0x50] sm:$0xff]
        %v186 = vld [vmem:[%s169 + $0x58] sm:$0xff]
        %v187 = vld [vmem:[%s169 + $0x60] sm:$0xff]
        %v188 = vld [vmem:[%s169 + $0x68] sm:$0xff]
        %v189 = vld [vmem:[%s169 + $0x70] sm:$0xff]
        %v190 = vld [vmem:[%s169 + $0x78] sm:$0xff]
        %v191 = vld [vmem:[%s169 + $0x80] sm:$0xff]
        %v192 = vld [vmem:[%s169 + $0x88] sm:$0xff]
        %v193 = vld [vmem:[%s169 + $0x90] sm:$0xff]
        %v194 = vld [vmem:[%s169 + $0x98] sm:$0xff]
        %v195 = vld [vmem:[%s169 + $0xa0] sm:$0xff]
        %v196 = vld [vmem:[%s169 + $0xa8] sm:$0xff]
        %v197 = vld [vmem:[%s169 + $0xb0] sm:$0xff]
        %v198 = vld [vmem:[%s169 + $0xb8] sm:$0xff]
        %v199 = vld [vmem:[%s169 + $0xc0] sm:$0xff]
        %v200 = vld [vmem:[%s169 + $0xc8] sm:$0xff]
        %v201 = vld [vmem:[%s169 + $0xd0] sm:$0xff]
        %v202 = vld [vmem:[%s169 + $0xd8] sm:$0xff]
        %v203 = vld [vmem:[%s169 + $0xe0] sm:$0xff]
        %v204 = vld [vmem:[%s169 + $0xe8] sm:$0xff]
        %v205 = vld [vmem:[%s169 + $0xf0] sm:$0xff]
        %v206 = vld [vmem:[%s169 + $0xf8] sm:$0xff]
        %v207 = vld [vmem:[%s2] sm:$0xff]
        %v208 = vld [vmem:[%s2 + $0x8] sm:$0xff]
        %v209 = vld [vmem:[%s2 + $0x10] sm:$0xff]
        %211 = vset.pattern.permute.xlu0 0
        %212 = vperm.xlu0 %211, %v207
        %v213 = vpop.permute.xlu0 %212
        %216 = vset.pattern.permute.xlu0 0
        %217 = vperm.xlu0 %216, %v208
        %v218 = vpop.permute.xlu0 %217
        %221 = vset.pattern.permute.xlu0 0
        %222 = vperm.xlu0 %221, %v209
        %v223 = vpop.permute.xlu0 %222
        %vm225 = vcmask 261120
        %v227 = vsel %vm225, %v172, 0
        %v230 = vsel %vm225, %v173, 0
        %v233 = vsel %vm225, %v174, 0
        %v236 = vsel %vm225, %v175, 0
        %v239 = vsel %vm225, %v176, 0
        %v242 = vsel %vm225, %v177, 0
        %v245 = vsel %vm225, %v178, 0
        %v248 = vsel %vm225, %v179, 0
        %v251 = vsel %vm225, %v180, 0
        %v254 = vsel %vm225, %v181, 0
        %v257 = vsel %vm225, %v182, 0
        %v260 = vsel %vm225, %v183, 0
        %v263 = vsel %vm225, %v184, 0
        %v266 = vsel %vm225, %v185, 0
        %v269 = vsel %vm225, %v186, 0
        %v272 = vsel %vm225, %v187, 0
        %v275 = vsel %vm225, %v188, 0
        %v278 = vsel %vm225, %v189, 0
        %v281 = vsel %vm225, %v190, 0
        %v284 = vsel %vm225, %v191, 0
        %v287 = vsel %vm225, %v192, 0
        %v290 = vsel %vm225, %v193, 0
        %v293 = vsel %vm225, %v194, 0
        %v296 = vsel %vm225, %v195, 0
        %v299 = vsel %vm225, %v196, 0
        %v302 = vsel %vm225, %v197, 0
        %v305 = vsel %vm225, %v198, 0
        %v308 = vsel %vm225, %v199, 0
        %v311 = vsel %vm225, %v200, 0
        %v314 = vsel %vm225, %v201, 0
        %v317 = vsel %vm225, %v202, 0
        %v320 = vsel %vm225, %v203, 0
        %v323 = vsel %vm225, %v204, 0
        %v326 = vsel %vm225, %v205, 0
        %v329 = vsel %vm225, %v206, 0
        %331 = vmatprep.subr.mxu0 0.0
        %332 = vmatpush1.xpose.msra.mxu0 %v236
        %333 = vmatprep.subr.mxu0 0.0
        %334 = vmatpush1.xpose.msra.mxu0 %v239
        %335 = vmatprep.subr.mxu0 0.0
        %336 = vmatpush1.xpose.msra.mxu0 %v242
        %337 = vmatprep.subr.mxu0 0.0
        %338 = vmatpush1.xpose.msra.mxu0 %v245
        %339 = vmatprep.subr.mxu0 0.0
        %340 = vmatpush1.xpose.msra.mxu0 %v248
        %341 = vmatprep.subr.mxu0 0.0
        %342 = vmatpush1.xpose.msra.mxu0 %v251
        %343 = vmatprep.subr.mxu0 0.0
        %344 = vmatpush1.xpose.msra.mxu0 %v254
        %345 = vmatprep.subr.mxu0 0.0
        %346 = vmatpush1.xpose.msra.mxu0 %v257
        %347 = vmatprep.subr.mxu0 0.0
        %348 = vmatpush1.xpose.msra.mxu0 %v260
        %349 = vmatprep.subr.mxu0 0.0
        %350 = vmatpush1.xpose.msra.mxu0 %v263
        %351 = vmatprep.subr.mxu0 0.0
        %352 = vmatpush1.xpose.msra.mxu0 %v266
        %353 = vmatprep.subr.mxu0 0.0
        %354 = vmatpush1.xpose.msra.mxu0 %v269
        %355 = vmatprep.subr.mxu0 0.0
        %356 = vmatpush1.xpose.msra.mxu0 %v272
        %357 = vmatprep.subr.mxu0 0.0
        %358 = vmatpush1.xpose.msra.mxu0 %v275
        %359 = vmatprep.subr.mxu0 0.0
        %360 = vmatpush1.xpose.msra.mxu0 %v278
        %361 = vmatprep.subr.mxu0 0.0
        %362 = vmatpush1.xpose.msra.mxu0 %v281
        %363 = vmatprep.subr.mxu0 0.0
        %364 = vmatpush1.xpose.msra.mxu0 %v284
        %365 = vmatprep.subr.mxu0 0.0
        %366 = vmatpush1.xpose.msra.mxu0 %v287
        %367 = vmatprep.subr.mxu0 0.0
        %368 = vmatpush1.xpose.msra.mxu0 %v290
        %369 = vmatprep.subr.mxu0 0.0
        %370 = vmatpush1.xpose.msra.mxu0 %v293
        %371 = vmatprep.subr.mxu0 0.0
        %372 = vmatpush1.xpose.msra.mxu0 %v296
        %373 = vmatprep.subr.mxu0 0.0
        %374 = vmatpush1.xpose.msra.mxu0 %v299
        %375 = vmatprep.subr.mxu0 0.0
        %376 = vmatpush1.xpose.msra.mxu0 %v302
        %377 = vmatprep.subr.mxu0 0.0
        %378 = vmatpush1.xpose.msra.mxu0 %v305
        %379 = vmatprep.subr.mxu0 0.0
        %380 = vmatpush1.xpose.msra.mxu0 %v308
        %381 = vmatprep.subr.mxu0 0.0
        %382 = vmatpush1.xpose.msra.mxu0 %v311
        %383 = vmatprep.subr.mxu0 0.0
        %384 = vmatpush1.xpose.msra.mxu0 %v314
        %385 = vmatprep.subr.mxu0 0.0
        %386 = vmatpush1.xpose.msra.mxu0 %v317
        %387 = vmatprep.subr.mxu0 0.0
        %388 = vmatpush1.xpose.msra.mxu0 %v320
        %389 = vmatprep.subr.mxu0 0.0
        %390 = vmatpush1.xpose.msra.mxu0 %v323
        %391 = vmatprep.subr.mxu0 0.0
        %392 = vmatpush1.xpose.msra.mxu0 %v326
        %393 = vmatprep.subr.mxu0 0.0
        %394 = vmatpush1.xpose.msra.mxu0 %v329
        %395 = vmatprep.mubr.f32.mxu0 0.0
        %396 = vmatmul.mubr.f32.gmra.mrb[0].mxu0 %v227
        %v397 = vpop.f32.mrb[0].mxu0
        %v398 = vadd.f32 %v213, %v397
        %v399 = vpop.f32.mrb[0].mxu0
        %v400 = vadd.f32 %v213, %v399
        %401 = vmatprep.mubr.f32.mxu0 0.0
        %402 = vmatmul.mubr.f32.gmra.mrb[0].mxu0 %v230
        %v403 = vpop.f32.mrb[0].mxu0
        %v404 = vadd.f32 %v218, %v403
        %v405 = vpop.f32.mrb[0].mxu0
        %v406 = vadd.f32 %v218, %v405
        %407 = vmatprep.mubr.f32.mxu0 0.0
        %408 = vmatmul.mubr.f32.gmra.mrb[0].mxu0 %v233
        %v409 = vpop.f32.mrb[0].mxu0
        %v410 = vadd.f32 %v223, %v409
        %v411 = vpop.f32.mrb[0].mxu0
        %v412 = vadd.f32 %v223, %v411
        %413 = vdwg.mxu0
        %414 = vst [vmem:[%s164] sm:$0xff] %v398
        %415 = vst [vmem:[%s164 + $0x8] sm:$0xff] %v400
        %416 = vst [vmem:[%s164 + $0x10] sm:$0xff] %v404
        %417 = vst [vmem:[%s164 + $0x18] sm:$0xff] %v406
        %418 = vst [vmem:[%s164 + $0x20] sm:$0xff] %v410
        %419 = vst [vmem:[%s164 + $0x28] sm:$0xff] %v412
        %s420 = sand.u32 %s93, 1
        %s421 = scalar_lea.sflag [#allocation3], %s420
        %s422 = sand.u32 %s93, 1
        %s423 = smul.addr %s422, 48
        %s424 = scalar_lea.vmem [#allocation2], %s423
        // Predicated region
        $region33: #{tpu_custom_call.1} parent=31 // pred_check
          %p425 = pneg %p103
        $region34: #{tpu_custom_call.1} parent=31 // pred_check_branch
          %427 = sbr.rel (%p425) target = $region36
        $region35: #{tpu_custom_call.1} parent=31 // pred_region
          %s428 = smul.u32 2, %s17
          %s430 = ssub.s32 768, 768
          %431 = vsyncadd %s421, %s430
          %s432 = smul.addr %s428, 128
          %s433 = scalar_lea.hbm %s3, %s432
          %s434 = sshll.u32 %s424, 4
          %s435 = int_to_ptr.vmem [resolvable:$true] %s434
          %440 = dma.vmem_to_hbm [thread:$0]  %s435, 768, %s433, %s421, 256, 512, 16
        $region36: #{tpu_custom_call.1} parent=31 // pred_fallthru
          _
      $region32: #{tpu_custom_call.1} parent=5 // pred_fallthru
        _
      %p441 = scmp.le.s32.totalorder 2, %s12
      // Predicated region
      $region37: #{tpu_custom_call.1} parent=5 // pred_check
        %p442 = pneg %p441
      $region38: #{tpu_custom_call.1} parent=5 // pred_check_branch
        %444 = sbr.rel (%p442) target = $region40
      $region39: #{tpu_custom_call.1} parent=5 // pred_region
        %s445 = ssub.s32 %s12, 2
        // Predicated region
        $region41: #{tpu_custom_call.1} parent=39 // pred_check
          %p446 = pneg %p109
        $region42: #{tpu_custom_call.1} parent=39 // pred_check_branch
          %448 = sbr.rel (%p446) target = $region44
        $region43: #{tpu_custom_call.1} parent=39 // pred_region
          %s449 = sand.u32 %s94, 1
          %s450 = scalar_lea.sflag [#allocation3], %s449
          %s451 = sand.u32 %s94, 1
          %s452 = smul.addr %s451, 48
          %s453 = scalar_lea.vmem [#allocation2], %s452
          %454 = dma.done %s450, 768
        $region44: #{tpu_custom_call.1} parent=39 // pred_fallthru
          _
      $region40: #{tpu_custom_call.1} parent=5 // pred_fallthru
        _
    $region6: #{tpu_custom_call.1} parent=1 // loop_footer
      %s16 = sadd.s32 1, %s12
    $region7: #{tpu_custom_call.1} parent=1 // loop_footer_branch
      %11 = sbr.rel target = $region3
    $region8: #{tpu_custom_call.1} parent=1 // loop_exit
      _
    %455 = vsyncpa [#allocation3], 1
    %s456 = scalar_lea.sflag [#allocation3], 1
    %457 = vsyncpa %s456, 1

</llo_original>
